<compile_context>
chip_gen: v7x
topology: tpu7x:2x2x1
jax: 0.10.0
libtpu: 0.0.40
codegen_flags: <defaults>
</compile_context>

<pallas_src>
import math

import jax
import jax.numpy as jnp
from jax.experimental import pallas as pl
from jax.experimental.pallas import tpu as pltpu

# "opt" hyper-parameters (small, consistent with the module)
CHANNELS = 3
IMG_SIZE = 16
IMG_FLAT = CHANNELS * IMG_SIZE * IMG_SIZE  # 768
BATCH = 8

H1 = 512
H2 = 256
LRELU_SLOPE = 0.2

OUT_LANES = 128      # lane-dense output block; wrapper slices column 0
MAX_TILE_B = 256     # one full MXU pass per grid step on v6e/v7x

# Packed 1-row parameter vector layout (f32). All offsets are 128-lane aligned
# and the total width is a multiple of 128 -> single unmasked lane-dense DMA.
S1_OFF = 0                 # dequant scale, layer 1 (512)
B1_OFF = H1                # bias, layer 1          (512)
S2_OFF = 2 * H1            # dequant scale, layer 2 (256)
B2_OFF = 2 * H1 + H2       # bias, layer 2          (256)
W3_OFF = 2 * H1 + 2 * H2   # final-layer weight row (256)
PACK_W = 2 * H1 + 3 * H2   # 1792


def _to_bf16(w):
    """Trace-time dispatch: bf16 weights pass through; int8 -> f32 -> bf16."""
    if w.dtype == jnp.bfloat16:
        return w
    return w.astype(jnp.float32).astype(jnp.bfloat16)


def discriminator_kernel(img_ref, w1_ref, w2_ref, pack_ref, b3_ref, out_ref):
    f32 = jnp.float32
    bf16 = jnp.bfloat16

    x = img_ref[...]                                  # (tile_B, 768) bf16

    s1 = pack_ref[:, S1_OFF:S1_OFF + H1]              # (1, 512) f32
    b1 = pack_ref[:, B1_OFF:B1_OFF + H1]              # (1, 512)
    s2 = pack_ref[:, S2_OFF:S2_OFF + H2]              # (1, 256)
    b2 = pack_ref[:, B2_OFF:B2_OFF + H2]              # (1, 256)
    w3 = pack_ref[:, W3_OFF:W3_OFF + H2]              # (1, 256)
    b3 = b3_ref[0]                                    # scalar from SMEM

    # Linear(768, 512) + LeakyReLU(0.2).  bf16 MXU inputs, f32 accumulate; the
    # per-column dequant scale is folded into the (tile_B, 512) epilogue.
    h = jnp.dot(x, _to_bf16(w1_ref[...]), preferred_element_type=f32) * s1 + b1
    h = jnp.maximum(h, LRELU_SLOPE * h)               # LeakyReLU as one VALU max

    # Linear(512, 256) + LeakyReLU(0.2)
    h = jnp.dot(h.astype(bf16), _to_bf16(w2_ref[...]),
                preferred_element_type=f32) * s2 + b2
    h = jnp.maximum(h, LRELU_SLOPE * h)

    # Linear(256, 1): VPU multiply + XLU row reduction (no degenerate N=1 MXU matmul)
    logit = jnp.sum(h * w3, axis=-1, keepdims=True) + b3   # (tile_B, 1) f32

    # Sigmoid: exp on EUP + approx reciprocal on EUP; clamp covers the tiny
    # approx overshoot so outputs stay in [0, 1].
    sig = jnp.minimum(pl.reciprocal(1.0 + jnp.exp(-logit), approx=True), 1.0)

    # Lane-dense store (tile_B, 128) -> unmasked vst; wrapper slices column 0.
    out_ref[...] = jnp.broadcast_to(sig, out_ref.shape)


# ----------------------------- host-side helpers -----------------------------

def _uniform(key, shape, fan_in):
    bound = 1.0 / math.sqrt(fan_in)
    return jax.random.uniform(key, shape, jnp.float32, -bound, bound)


def init_reference_params(key):
    """f32 params mimicking nn.Linear defaults; weights stored (in, out)."""
    k = jax.random.split(key, 6)
    w1 = _uniform(k[0], (IMG_FLAT, H1), IMG_FLAT)
    b1 = _uniform(k[1], (H1,), IMG_FLAT)
    w2 = _uniform(k[2], (H1, H2), H1)
    b2 = _uniform(k[3], (H2,), H1)
    w3 = _uniform(k[4], (H2,), H2)        # Linear(256, 1) weight as a row vector
    b3 = _uniform(k[5], (1,), H2)
    return w1, b1, w2, b2, w3, b3


def _quantize_per_col(w):
    """Symmetric per-output-column int8 quantization -> (q_int8, scale_f32)."""
    amax = jnp.max(jnp.abs(w), axis=0)
    scale = jnp.maximum(amax, 1e-12) / 127.0
    q = jnp.clip(jnp.round(w / scale), -127, 127).astype(jnp.int8)
    return q, scale


def pick_weight_format():
    """int8 weights on v5e/v6e (halves dominant HBM bytes); bf16 on v7x."""
    # TODO(synk): on v7x the narrow option would be fp8 (e4m3), not int8.
    try:
        kind = jax.devices()[0].device_kind.lower()
    except Exception:
        return "bf16"
    return "bf16" if ("v7" in kind or "7x" in kind) else "int8"


def prepare_kernel_params(ref_params, weight_format):
    w1, b1, w2, b2, w3, b3 = ref_params
    if weight_format == "int8":
        w1_k, s1 = _quantize_per_col(w1)
        w2_k, s2 = _quantize_per_col(w2)
    else:
        w1_k, s1 = w1.astype(jnp.bfloat16), jnp.ones((H1,), jnp.float32)
        w2_k, s2 = w2.astype(jnp.bfloat16), jnp.ones((H2,), jnp.float32)
    packed = jnp.concatenate([s1, b1, s2, b2, w3])[None, :]   # (1, 1792) f32
    assert packed.shape == (1, PACK_W)
    return w1_k, w2_k, packed, b3.astype(jnp.float32)          # b3: (1,)


def _round_up(x, m):
    return (x + m - 1) // m * m


def discriminator_forward(img, w1, w2, packed, b3):
    B = img.shape[0]
    # img.view(B, -1); cast to bf16 in the wrapper (the MXU consumes bf16 anyway).
    x = img.reshape(B, -1).astype(jnp.bfloat16)

    # Row tiling: single grid step at small batch (no extra per-step overhead);
    # at large batch a "parallel" grid over row tiles keeps the weights
    # VMEM-resident (index_map -> (0, 0)) while only the image block streams.
    if B <= MAX_TILE_B:
        tile_b = _round_up(B, 16) if B > 8 else 8   # 16-row bf16 sublane packing once batch grows
    else:
        tile_b = MAX_TILE_B
    b_pad = _round_up(B, tile_b)
    if b_pad != B:
        x = jnp.pad(x, ((0, b_pad - B), (0, 0)))
    grid = (b_pad // tile_b,)

    flops = 2 * b_pad * (IMG_FLAT * H1 + H1 * H2 + H2)
    bytes_accessed = (
        w1.size * w1.dtype.itemsize + w2.size * w2.dtype.itemsize
        + packed.size * 4 + b3.size * 4
        + x.size * 2 + b_pad * OUT_LANES * 4
    )
    cost = pl.CostEstimate(flops=flops, transcendentals=2 * b_pad,
                           bytes_accessed=bytes_accessed)

    out = pl.pallas_call(
        discriminator_kernel,
        out_shape=jax.ShapeDtypeStruct((b_pad, OUT_LANES), jnp.float32),
        grid=grid,
        in_specs=[
            pl.BlockSpec((tile_b, IMG_FLAT), lambda i: (i, 0)),   # streams per step
            pl.BlockSpec((IMG_FLAT, H1), lambda i: (0, 0)),       # VMEM-resident
            pl.BlockSpec((H1, H2), lambda i: (0, 0)),             # VMEM-resident
            pl.BlockSpec((1, PACK_W), lambda i: (0, 0)),          # VMEM-resident
            pl.BlockSpec(memory_space=pltpu.MemorySpace.SMEM),    # scalar b3
        ],
        out_specs=pl.BlockSpec((tile_b, OUT_LANES), lambda i: (i, 0)),
        compiler_params=pltpu.CompilerParams(
            dimension_semantics=("parallel",),
            vmem_limit_bytes=8 << 20,
        ),
        cost_estimate=cost,
    )(x, w1, w2, packed, b3)

    return out[:B, :1]


def discriminator_reference(img, ref_params):
    """Pure-JAX f32 reference of the PyTorch module (for parity checking)."""
    w1, b1, w2, b2, w3, b3 = ref_params
    x = img.reshape(img.shape[0], -1)
    h = x @ w1 + b1
    h = jnp.where(h > 0, h, LRELU_SLOPE * h)
    h = h @ w2 + b2
    h = jnp.where(h > 0, h, LRELU_SLOPE * h)
    logit = h @ w3[:, None] + b3
    return jax.nn.sigmoid(logit)


if __name__ == "__main__":
    key = jax.random.PRNGKey(0)
    pkey, xkey = jax.random.split(key)

    ref_params = init_reference_params(pkey)
    weight_format = pick_weight_format()
    w1_k, w2_k, packed, b3 = prepare_kernel_params(ref_params, weight_format)

    # Fake generator output in [-1, 1], NCHW.
    img = jax.random.uniform(
        xkey, (BATCH, CHANNELS, IMG_SIZE, IMG_SIZE), jnp.float32, -1.0, 1.0
    )

    validity = discriminator_forward(img, w1_k, w2_k, packed, b3)
    jax.block_until_ready(validity)

    assert validity.shape == (BATCH, 1)
    assert validity.dtype == jnp.float32
    # Sigmoid output must be in [0, 1]
    assert bool(jnp.all((validity >= 0.0) & (validity <= 1.0)))
    # Loose parity vs. f32 reference (bf16 MXU inputs + int8 weights are a
    # deliberate low-precision deviation; tolerance accordingly coarse).
    expected = discriminator_reference(img, ref_params)
    assert bool(jnp.all(jnp.abs(validity - expected) < 5e-2))

    print("KERNEL_OK")
</pallas_src>

<mosaic_0001>
module attributes {stable_mosaic.version = 11 : i64} {
  func.func @discriminator_kernel(%arg0: i32, %arg1: memref<8x768xbf16, #tpu.memory_space<vmem>>, %arg2: memref<768x512xi8, #tpu.memory_space<vmem>>, %arg3: memref<512x256xi8, #tpu.memory_space<vmem>>, %arg4: memref<1x1792xf32, #tpu.memory_space<vmem>>, %arg5: memref<1xf32, #tpu.memory_space<smem>>, %arg6: memref<8x128xf32, #tpu.memory_space<vmem>>) attributes {dimension_semantics = [#tpu.dimension_semantics<parallel>], iteration_bounds = array<i64: 1>, scalar_prefetch = 0 : i64, scratch_operands = 0 : i64, tpu.core_type = #tpu.core_type<tc>, window_params = [{transform_indices = @transform_0, window_bounds = array<i64: 8, 768>}, {pipeline_mode = #tpu.pipeline_mode<synchronous>, transform_indices = @transform_1, window_bounds = array<i64: 768, 512>}, {pipeline_mode = #tpu.pipeline_mode<synchronous>, transform_indices = @transform_2, window_bounds = array<i64: 512, 256>}, {pipeline_mode = #tpu.pipeline_mode<synchronous>, transform_indices = @transform_3, window_bounds = array<i64: 1, 1792>}, {transform_indices = @transform_4, window_bounds = array<i64: 1>}, {transform_indices = @transform_5, window_bounds = array<i64: 8, 128>}]} {
    %c0 = arith.constant 0 : index
    %c0_0 = arith.constant 0 : index
    %0 = vector.load %arg1[%c0, %c0_0] : memref<8x768xbf16, #tpu.memory_space<vmem>>, vector<8x768xbf16>
    %c0_1 = arith.constant 0 : index
    %c0_2 = arith.constant 0 : index
    %1 = vector.load %arg4[%c0_1, %c0_2] : memref<1x1792xf32, #tpu.memory_space<vmem>>, vector<1x512xf32>
    %c0_3 = arith.constant 0 : index
    %c512 = arith.constant 512 : index
    %2 = vector.load %arg4[%c0_3, %c512] : memref<1x1792xf32, #tpu.memory_space<vmem>>, vector<1x512xf32>
    %c0_4 = arith.constant 0 : index
    %c1024 = arith.constant 1024 : index
    %3 = vector.load %arg4[%c0_4, %c1024] : memref<1x1792xf32, #tpu.memory_space<vmem>>, vector<1x256xf32>
    %c0_5 = arith.constant 0 : index
    %c1280 = arith.constant 1280 : index
    %4 = vector.load %arg4[%c0_5, %c1280] : memref<1x1792xf32, #tpu.memory_space<vmem>>, vector<1x256xf32>
    %c0_6 = arith.constant 0 : index
    %c1536 = arith.constant 1536 : index
    %5 = vector.load %arg4[%c0_6, %c1536] : memref<1x1792xf32, #tpu.memory_space<vmem>>, vector<1x256xf32>
    %c0_7 = arith.constant 0 : index
    %6 = memref.load %arg5[%c0_7] : memref<1xf32, #tpu.memory_space<smem>>
    %c0_8 = arith.constant 0 : index
    %c0_9 = arith.constant 0 : index
    %7 = vector.load %arg2[%c0_8, %c0_9] : memref<768x512xi8, #tpu.memory_space<vmem>>, vector<768x512xi8>
    %8 = arith.sitofp %7 : vector<768x512xi8> to vector<768x512xf32>
    %9 = arith.truncf %8 : vector<768x512xf32> to vector<768x512xbf16>
    %cst = arith.constant dense<0.000000e+00> : vector<8x512xf32>
    %10 = tpu.matmul %0, %9, %cst {dimension_numbers = #tpu.dot_dimension_numbers<[1], [0], [0], [1], [0, 0, 1, 1], [], []>} : vector<8x768xbf16>, vector<768x512xbf16>, vector<8x512xf32> -> vector<8x512xf32>
    %11 = vector.broadcast %1 : vector<1x512xf32> to vector<8x512xf32>
    %12 = arith.mulf %10, %11 : vector<8x512xf32>
    %13 = vector.broadcast %2 : vector<1x512xf32> to vector<8x512xf32>
    %14 = arith.addf %12, %13 : vector<8x512xf32>
    %cst_10 = arith.constant 2.000000e-01 : f32
    %15 = vector.broadcast %cst_10 : f32 to vector<8x512xf32>
    %16 = arith.mulf %15, %14 : vector<8x512xf32>
    %17 = arith.maximumf %14, %16 : vector<8x512xf32>
    %18 = arith.truncf %17 : vector<8x512xf32> to vector<8x512xbf16>
    %c0_11 = arith.constant 0 : index
    %c0_12 = arith.constant 0 : index
    %19 = vector.load %arg3[%c0_11, %c0_12] : memref<512x256xi8, #tpu.memory_space<vmem>>, vector<512x256xi8>
    %20 = arith.sitofp %19 : vector<512x256xi8> to vector<512x256xf32>
    %21 = arith.truncf %20 : vector<512x256xf32> to vector<512x256xbf16>
    %cst_13 = arith.constant dense<0.000000e+00> : vector<8x256xf32>
    %22 = tpu.matmul %18, %21, %cst_13 {dimension_numbers = #tpu.dot_dimension_numbers<[1], [0], [0], [1], [0, 0, 1, 1], [], []>} : vector<8x512xbf16>, vector<512x256xbf16>, vector<8x256xf32> -> vector<8x256xf32>
    %23 = vector.broadcast %3 : vector<1x256xf32> to vector<8x256xf32>
    %24 = arith.mulf %22, %23 : vector<8x256xf32>
    %25 = vector.broadcast %4 : vector<1x256xf32> to vector<8x256xf32>
    %26 = arith.addf %24, %25 : vector<8x256xf32>
    %cst_14 = arith.constant 2.000000e-01 : f32
    %27 = vector.broadcast %cst_14 : f32 to vector<8x256xf32>
    %28 = arith.mulf %27, %26 : vector<8x256xf32>
    %29 = arith.maximumf %26, %28 : vector<8x256xf32>
    %30 = vector.broadcast %5 : vector<1x256xf32> to vector<8x256xf32>
    %31 = arith.mulf %29, %30 : vector<8x256xf32>
    %cst_15 = arith.constant dense<0.000000e+00> : vector<8xf32>
    %32 = vector.multi_reduction <add>, %31, %cst_15 [1] : vector<8x256xf32> to vector<8xf32>
    %33 = vector.shape_cast %32 : vector<8xf32> to vector<8x1xf32>
    %34 = vector.broadcast %6 : f32 to vector<8x1xf32>
    %35 = arith.addf %33, %34 : vector<8x1xf32>
    %cst_16 = arith.constant 0.000000e+00 : f32
    %36 = vector.broadcast %cst_16 : f32 to vector<8x1xf32>
    %37 = arith.subf %36, %35 : vector<8x1xf32>
    %38 = math.exp %37 : vector<8x1xf32>
    %cst_17 = arith.constant 1.000000e+00 : f32
    %39 = vector.broadcast %cst_17 : f32 to vector<8x1xf32>
    %40 = arith.addf %39, %38 : vector<8x1xf32>
    %41 = tpu.reciprocal %40 {approx = true} : vector<8x1xf32> -> vector<8x1xf32>
    %cst_18 = arith.constant 1.000000e+00 : f32
    %42 = vector.broadcast %cst_18 : f32 to vector<8x1xf32>
    %43 = arith.minimumf %41, %42 : vector<8x1xf32>
    %44 = vector.shape_cast %43 : vector<8x1xf32> to vector<8x1xf32>
    %45 = vector.broadcast %44 : vector<8x1xf32> to vector<8x128xf32>
    %c0_19 = arith.constant 0 : index
    %c0_20 = arith.constant 0 : index
    %46 = vector.load %arg6[%c0_19, %c0_20] : memref<8x128xf32, #tpu.memory_space<vmem>>, vector<8x128xf32>
    tpu.vector_store %arg6[%c0_19, %c0_20], %45 {strides = array<i32>} : memref<8x128xf32, #tpu.memory_space<vmem>>, vector<8x128xf32>,
    return
  }
  func.func @transform_0(%arg0: i32) -> (i32, i32) {
    %c0_i32 = arith.constant 0 : i32
    %c0_i32_0 = arith.constant 0 : i32
    return %arg0, %c0_i32 : i32, i32
  }
  func.func @transform_1(%arg0: i32) -> (i32, i32) {
    %c0_i32 = arith.constant 0 : i32
    %c0_i32_0 = arith.constant 0 : i32
    %c0_i32_1 = arith.constant 0 : i32
    return %c0_i32, %c0_i32_0 : i32, i32
  }
  func.func @transform_2(%arg0: i32) -> (i32, i32) {
    %c0_i32 = arith.constant 0 : i32
    %c0_i32_0 = arith.constant 0 : i32
    %c0_i32_1 = arith.constant 0 : i32
    return %c0_i32, %c0_i32_0 : i32, i32
  }
  func.func @transform_3(%arg0: i32) -> (i32, i32) {
    %c0_i32 = arith.constant 0 : i32
    %c0_i32_0 = arith.constant 0 : i32
    %c0_i32_1 = arith.constant 0 : i32
    return %c0_i32, %c0_i32_0 : i32, i32
  }
  func.func @transform_4(%arg0: i32) -> i32 {
    %c0_i32 = arith.constant 0 : i32
    %c0_i32_0 = arith.constant 0 : i32
    return %c0_i32 : i32
  }
  func.func @transform_5(%arg0: i32) -> (i32, i32) {
    %c0_i32 = arith.constant 0 : i32
    %c0_i32_0 = arith.constant 0 : i32
    return %arg0, %c0_i32 : i32, i32
  }
}

</mosaic_0001>

<llo_original>
// kernel: tpu_custom_call.1
$region0: #{tpu_custom_call.1}
  #allocation0 [shape = 'u32[]', space=smem, size = 0x4, offset = 0x4, fixed_abs, tag = 'smem constant byte address 0x4 - core index']
  #allocation1 [shape = 'u32[144,128]{1,0:T(1,128)}', space=vmem, size = 0x12000, scoped, tag = 'internal scratch']
  #allocation2 [shape = 'f32[1]{0:T(128)S(6)}', space=smem, size = 0x200, scoped, tag = 'scoped memory for tpu_custom_call.1']
  %s0 = inlined_call_operand.hbm [shape: bf16[8,768], index: 0, kind: input, shape index: {}]
  %s1 = inlined_call_operand.hbm [shape: s8[768,512], index: 1, kind: input, shape index: {}]
  %s2 = inlined_call_operand.hbm [shape: s8[512,256], index: 2, kind: input, shape index: {}]
  %s3 = inlined_call_operand.vmem [shape: f32[1,1792], index: 3, kind: input, shape index: {}]
  %s4 = inlined_call_operand.<no memory space> [shape: f32[1], index: 4, kind: input, shape index: {}]
  %s5 = inlined_call_operand.hbm [shape: f32[8,128], index: 5, kind: output, shape index: {}]
  %s6 = sld [smem:[#allocation0]]
  $region42: #{tpu_custom_call.1} parent=0
    _
  %s8 = ssub.s32 1, %s6
  %s9 = scalar_select 0, %s8, %s6
  %10 = sst [smem:[#allocation2]] %s4
  $region1: #{tpu_custom_call.1} parent=0
    #allocation3 [shape = 'u8[12288]{0}', space=vmem, size = 0x3000, scoped, tag = 'input window, operand 0, single buffered']
    #allocation4 [shape = 's32[1]{0}', space=sflag, size = 0x4, scoped, tag = 'scoped memory for tpu_custom_call.1']
    #allocation5 [shape = 's32[1]{0}', space=sflag, size = 0x4, scoped, tag = 'scoped memory for tpu_custom_call.1']
    #allocation6 [shape = 'u8[393216]{0}', space=vmem, size = 0x60000, scoped, tag = 'input window, operand 1, single buffered']
    #allocation7 [shape = 's32[1]{0}', space=sflag, size = 0x4, scoped, tag = 'scoped memory for tpu_custom_call.1']
    #allocation8 [shape = 'u8[131072]{0}', space=vmem, size = 0x20000, scoped, tag = 'input window, operand 2, single buffered']
    #allocation9 [shape = 'u8[4096]{0}', space=vmem, size = 0x1000, scoped, tag = 'output window, operand 0, single buffered']
    %11 = vsyncpa [#allocation4], 0
    %12 = vsyncpa [#allocation7], 0
    %13 = vsyncpa [#allocation5], 0
    // Predicated region
    $region2: #{tpu_custom_call.1} parent=1 // pred_check
      _
    $region3: #{tpu_custom_call.1} parent=1 // pred_check_branch
      %15 = sbr.rel (0) target = $region5
    $region4: #{tpu_custom_call.1} parent=1 // pred_region
      %s17 = ssub.s32 384, 384
      %18 = vsyncadd [#allocation4], %s17
      %s20 = sshll.u32 [#allocation3], 4
      %s21 = int_to_ptr.vmem [resolvable:$true] %s20
      %23 = dma.hbm_to_vmem [thread:$0]  %s0, 384, %s21, [#allocation4]
    $region5: #{tpu_custom_call.1} parent=1 // pred_fallthru
      _
    // Predicated region
    $region6: #{tpu_custom_call.1} parent=1 // pred_check
      _
    $region7: #{tpu_custom_call.1} parent=1 // pred_check_branch
      %25 = sbr.rel (0) target = $region9
    $region8: #{tpu_custom_call.1} parent=1 // pred_region
      %s27 = ssub.s32 12288, 12288
      %28 = vsyncadd [#allocation7], %s27
      %s29 = sshll.u32 [#allocation6], 4
      %s30 = int_to_ptr.vmem [resolvable:$true] %s29
      %35 = dma.hbm_to_vmem [thread:$0]  %s1, 12288, %s30, [#allocation7], 512, 512, 32
    $region9: #{tpu_custom_call.1} parent=1 // pred_fallthru
      _
    // Predicated region
    $region10: #{tpu_custom_call.1} parent=1 // pred_check
      _
    $region11: #{tpu_custom_call.1} parent=1 // pred_check_branch
      %37 = sbr.rel (0) target = $region13
    $region12: #{tpu_custom_call.1} parent=1 // pred_region
      %s39 = ssub.s32 4096, 4096
      %40 = vsyncadd [#allocation7], %s39
      %s41 = sshll.u32 [#allocation8], 4
      %s42 = int_to_ptr.vmem [resolvable:$true] %s41
      %47 = dma.hbm_to_vmem [thread:$0]  %s2, 4096, %s42, [#allocation7], 256, 256, 16
    $region13: #{tpu_custom_call.1} parent=1 // pred_fallthru
      _
    // Predicated region
    $region14: #{tpu_custom_call.1} parent=1 // pred_check
      _
    $region15: #{tpu_custom_call.1} parent=1 // pred_check_branch
      %49 = sbr.rel (0) target = $region17
    $region16: #{tpu_custom_call.1} parent=1 // pred_region
      _
    $region17: #{tpu_custom_call.1} parent=1 // pred_fallthru
      _
    // Predicated region
    $region18: #{tpu_custom_call.1} parent=1 // pred_check
      _
    $region19: #{tpu_custom_call.1} parent=1 // pred_check_branch
      %51 = sbr.rel (0) target = $region21
    $region20: #{tpu_custom_call.1} parent=1 // pred_region
      _
    $region21: #{tpu_custom_call.1} parent=1 // pred_fallthru
      _
    // Predicated region
    $region22: #{tpu_custom_call.1} parent=1 // pred_check
      _
    $region23: #{tpu_custom_call.1} parent=1 // pred_check_branch
      %53 = sbr.rel (0) target = $region25
    $region24: #{tpu_custom_call.1} parent=1 // pred_region
      %54 = dma.done [#allocation4], 384
    $region25: #{tpu_custom_call.1} parent=1 // pred_fallthru
      _
    // Predicated region
    $region26: #{tpu_custom_call.1} parent=1 // pred_check
      _
    $region27: #{tpu_custom_call.1} parent=1 // pred_check_branch
      %56 = sbr.rel (0) target = $region29
    $region28: #{tpu_custom_call.1} parent=1 // pred_region
      %57 = dma.done [#allocation7], 12288
    $region29: #{tpu_custom_call.1} parent=1 // pred_fallthru
      _
    // Predicated region
    $region30: #{tpu_custom_call.1} parent=1 // pred_check
      _
    $region31: #{tpu_custom_call.1} parent=1 // pred_check_branch
      %59 = sbr.rel (0) target = $region33
    $region32: #{tpu_custom_call.1} parent=1 // pred_region
      %60 = dma.done [#allocation7], 4096
    $region33: #{tpu_custom_call.1} parent=1 // pred_fallthru
      _
    %v61 = vld [vmem:[#allocation3] sm:$0xff]
    %v62 = vld [vmem:[#allocation3 + $0x8] sm:$0xff]
    %v63 = vld [vmem:[#allocation3 + $0x10] sm:$0xff]
    %v64 = vld [vmem:[%s3] sm:$0xf]
    %v65 = vld [vmem:[%s3 + $0x4] sm:$0xf]
    %v66 = vld [vmem:[%s3 + $0x8] sm:$0x3]
    %v67 = vld [vmem:[%s3 + $0xa] sm:$0x3]
    %v68 = vld [vmem:[%s3 + $0xc] sm:$0x3]
    %s69 = sld [smem:[#allocation2]]
    %v70 = vld [vmem:[#allocation6] sm:$0xff]
    %v71 = vld [vmem:[#allocation6 + $0x8] sm:$0xff]
    %v72 = vld [vmem:[#allocation6 + $0x10] sm:$0xff]
    %v73 = vld [vmem:[#allocation6 + $0x18] sm:$0xff]
    %v74 = vld [vmem:[#allocation6 + $0x20] sm:$0xff]
    %v75 = vld [vmem:[#allocation6 + $0x28] sm:$0xff]
    %v76 = vld [vmem:[#allocation6 + $0x30] sm:$0xff]
    %v77 = vld [vmem:[#allocation6 + $0x38] sm:$0xff]
    %v78 = vld [vmem:[#allocation6 + $0x40] sm:$0xff]
    %v79 = vld [vmem:[#allocation6 + $0x48] sm:$0xff]
    %v80 = vld [vmem:[#allocation6 + $0x50] sm:$0xff]
    %v81 = vld [vmem:[#allocation6 + $0x58] sm:$0xff]
    %v82 = vld [vmem:[#allocation6 + $0x60] sm:$0xff]
    %v83 = vld [vmem:[#allocation6 + $0x68] sm:$0xff]
    %v84 = vld [vmem:[#allocation6 + $0x70] sm:$0xff]
    %v85 = vld [vmem:[#allocation6 + $0x78] sm:$0xff]
    %v86 = vld [vmem:[#allocation6 + $0x80] sm:$0xff]
    %v87 = vld [vmem:[#allocation6 + $0x88] sm:$0xff]
    %v88 = vld [vmem:[#allocation6 + $0x90] sm:$0xff]
    %v89 = vld [vmem:[#allocation6 + $0x98] sm:$0xff]
    %v90 = vld [vmem:[#allocation6 + $0xa0] sm:$0xff]
    %v91 = vld [vmem:[#allocation6 + $0xa8] sm:$0xff]
    %v92 = vld [vmem:[#allocation6 + $0xb0] sm:$0xff]
    %v93 = vld [vmem:[#allocation6 + $0xb8] sm:$0xff]
    %v94 = vld [vmem:[#allocation6 + $0xc0] sm:$0xff]
    %v95 = vld [vmem:[#allocation6 + $0xc8] sm:$0xff]
    %v96 = vld [vmem:[#allocation6 + $0xd0] sm:$0xff]
    %v97 = vld [vmem:[#allocation6 + $0xd8] sm:$0xff]
    %v98 = vld [vmem:[#allocation6 + $0xe0] sm:$0xff]
    %v99 = vld [vmem:[#allocation6 + $0xe8] sm:$0xff]
    %v100 = vld [vmem:[#allocation6 + $0xf0] sm:$0xff]
    %v101 = vld [vmem:[#allocation6 + $0xf8] sm:$0xff]
    %v102 = vld [vmem:[#allocation6 + $0x100] sm:$0xff]
    %v103 = vld [vmem:[#allocation6 + $0x108] sm:$0xff]
    %v104 = vld [vmem:[#allocation6 + $0x110] sm:$0xff]
    %v105 = vld [vmem:[#allocation6 + $0x118] sm:$0xff]
    %v106 = vld [vmem:[#allocation6 + $0x120] sm:$0xff]
    %v107 = vld [vmem:[#allocation6 + $0x128] sm:$0xff]
    %v108 = vld [vmem:[#allocation6 + $0x130] sm:$0xff]
    %v109 = vld [vmem:[#allocation6 + $0x138] sm:$0xff]
    %v110 = vld [vmem:[#allocation6 + $0x140] sm:$0xff]
    %v111 = vld [vmem:[#allocation6 + $0x148] sm:$0xff]
    %v112 = vld [vmem:[#allocation6 + $0x150] sm:$0xff]
    %v113 = vld [vmem:[#allocation6 + $0x158] sm:$0xff]
    %v114 = vld [vmem:[#allocation6 + $0x160] sm:$0xff]
    %v115 = vld [vmem:[#allocation6 + $0x168] sm:$0xff]
    %v116 = vld [vmem:[#allocation6 + $0x170] sm:$0xff]
    %v117 = vld [vmem:[#allocation6 + $0x178] sm:$0xff]
    %v118 = vld [vmem:[#allocation6 + $0x180] sm:$0xff]
    %v119 = vld [vmem:[#allocation6 + $0x188] sm:$0xff]
    %v120 = vld [vmem:[#allocation6 + $0x190] sm:$0xff]
    %v121 = vld [vmem:[#allocation6 + $0x198] sm:$0xff]
    %v122 = vld [vmem:[#allocation6 + $0x1a0] sm:$0xff]
    %v123 = vld [vmem:[#allocation6 + $0x1a8] sm:$0xff]
    %v124 = vld [vmem:[#allocation6 + $0x1b0] sm:$0xff]
    %v125 = vld [vmem:[#allocation6 + $0x1b8] sm:$0xff]
    %v126 = vld [vmem:[#allocation6 + $0x1c0] sm:$0xff]
    %v127 = vld [vmem:[#allocation6 + $0x1c8] sm:$0xff]
    %v128 = vld [vmem:[#allocation6 + $0x1d0] sm:$0xff]
    %v129 = vld [vmem:[#allocation6 + $0x1d8] sm:$0xff]
    %v130 = vld [vmem:[#allocation6 + $0x1e0] sm:$0xff]
    %v131 = vld [vmem:[#allocation6 + $0x1e8] sm:$0xff]
    %v132 = vld [vmem:[#allocation6 + $0x1f0] sm:$0xff]
    %v133 = vld [vmem:[#allocation6 + $0x1f8] sm:$0xff]
    %v134 = vld [vmem:[#allocation6 + $0x200] sm:$0xff]
    %v135 = vld [vmem:[#allocation6 + $0x208] sm:$0xff]
    %v136 = vld [vmem:[#allocation6 + $0x210] sm:$0xff]
    %v137 = vld [vmem:[#allocation6 + $0x218] sm:$0xff]
    %v138 = vld [vmem:[#allocation6 + $0x220] sm:$0xff]
    %v139 = vld [vmem:[#allocation6 + $0x228] sm:$0xff]
    %v140 = vld [vmem:[#allocation6 + $0x230] sm:$0xff]
    %v141 = vld [vmem:[#allocation6 + $0x238] sm:$0xff]
    %v142 = vld [vmem:[#allocation6 + $0x240] sm:$0xff]
    %v143 = vld [vmem:[#allocation6 + $0x248] sm:$0xff]
    %v144 = vld [vmem:[#allocation6 + $0x250] sm:$0xff]
    %v145 = vld [vmem:[#allocation6 + $0x258] sm:$0xff]
    %v146 = vld [vmem:[#allocation6 + $0x260] sm:$0xff]
    %v147 = vld [vmem:[#allocation6 + $0x268] sm:$0xff]
    %v148 = vld [vmem:[#allocation6 + $0x270] sm:$0xff]
    %v149 = vld [vmem:[#allocation6 + $0x278] sm:$0xff]
    %v150 = vld [vmem:[#allocation6 + $0x280] sm:$0xff]
    %v151 = vld [vmem:[#allocation6 + $0x288] sm:$0xff]
    %v152 = vld [vmem:[#allocation6 + $0x290] sm:$0xff]
    %v153 = vld [vmem:[#allocation6 + $0x298] sm:$0xff]
    %v154 = vld [vmem:[#allocation6 + $0x2a0] sm:$0xff]
    %v155 = vld [vmem:[#allocation6 + $0x2a8] sm:$0xff]
    %v156 = vld [vmem:[#allocation6 + $0x2b0] sm:$0xff]
    %v157 = vld [vmem:[#allocation6 + $0x2b8] sm:$0xff]
    %v158 = vld [vmem:[#allocation6 + $0x2c0] sm:$0xff]
    %v159 = vld [vmem:[#allocation6 + $0x2c8] sm:$0xff]
    %v160 = vld [vmem:[#allocation6 + $0x2d0] sm:$0xff]
    %v161 = vld [vmem:[#allocation6 + $0x2d8] sm:$0xff]
    %v162 = vld [vmem:[#allocation6 + $0x2e0] sm:$0xff]
    %v163 = vld [vmem:[#allocation6 + $0x2e8] sm:$0xff]
    %v164 = vld [vmem:[#allocation6 + $0x2f0] sm:$0xff]
    %v165 = vld [vmem:[#allocation6 + $0x2f8] sm:$0xff]
    %v166 = vunpack.c.l.s8.bf16 %v70
    %v167 = vunpack.c.l.s8.bf16 %v71
    %v168 = vunpack.c.l.s8.bf16 %v72
    %v169 = vunpack.c.l.s8.bf16 %v73
    %v170 = vunpack.c.h.s8.bf16 %v70
    %v171 = vunpack.c.h.s8.bf16 %v71
    %v172 = vunpack.c.h.s8.bf16 %v72
    %v173 = vunpack.c.h.s8.bf16 %v73
    %v174 = vunpack.c.l.s8.bf16 %v74
    %v175 = vunpack.c.l.s8.bf16 %v75
    %v176 = vunpack.c.l.s8.bf16 %v76
    %v177 = vunpack.c.l.s8.bf16 %v77
    %v178 = vunpack.c.h.s8.bf16 %v74
    %v179 = vunpack.c.h.s8.bf16 %v75
    %v180 = vunpack.c.h.s8.bf16 %v76
    %v181 = vunpack.c.h.s8.bf16 %v77
    %v182 = vunpack.c.l.s8.bf16 %v78
    %v183 = vunpack.c.l.s8.bf16 %v79
    %v184 = vunpack.c.l.s8.bf16 %v80
    %v185 = vunpack.c.l.s8.bf16 %v81
    %v186 = vunpack.c.h.s8.bf16 %v78
    %v187 = vunpack.c.h.s8.bf16 %v79
    %v188 = vunpack.c.h.s8.bf16 %v80
    %v189 = vunpack.c.h.s8.bf16 %v81
    %v190 = vunpack.c.l.s8.bf16 %v82
    %v191 = vunpack.c.l.s8.bf16 %v83
    %v192 = vunpack.c.l.s8.bf16 %v84
    %v193 = vunpack.c.l.s8.bf16 %v85
    %v194 = vunpack.c.h.s8.bf16 %v82
    %v195 = vunpack.c.h.s8.bf16 %v83
    %v196 = vunpack.c.h.s8.bf16 %v84
    %v197 = vunpack.c.h.s8.bf16 %v85
    %v198 = vunpack.c.l.s8.bf16 %v86
    %v199 = vunpack.c.l.s8.bf16 %v87
    %v200 = vunpack.c.l.s8.bf16 %v88
    %v201 = vunpack.c.l.s8.bf16 %v89
    %v202 = vunpack.c.h.s8.bf16 %v86
    %v203 = vunpack.c.h.s8.bf16 %v87
    %v204 = vunpack.c.h.s8.bf16 %v88
    %v205 = vunpack.c.h.s8.bf16 %v89
    %v206 = vunpack.c.l.s8.bf16 %v90
    %v207 = vunpack.c.l.s8.bf16 %v91
    %v208 = vunpack.c.l.s8.bf16 %v92
    %v209 = vunpack.c.l.s8.bf16 %v93
    %v210 = vunpack.c.h.s8.bf16 %v90
    %v211 = vunpack.c.h.s8.bf16 %v91
    %v212 = vunpack.c.h.s8.bf16 %v92
    %v213 = vunpack.c.h.s8.bf16 %v93
    %v214 = vunpack.c.l.s8.bf16 %v94
    %v215 = vunpack.c.l.s8.bf16 %v95
    %v216 = vunpack.c.l.s8.bf16 %v96
    %v217 = vunpack.c.l.s8.bf16 %v97
    %v218 = vunpack.c.h.s8.bf16 %v94
    %v219 = vunpack.c.h.s8.bf16 %v95
    %v220 = vunpack.c.h.s8.bf16 %v96
    %v221 = vunpack.c.h.s8.bf16 %v97
    %v222 = vunpack.c.l.s8.bf16 %v98
    %v223 = vunpack.c.l.s8.bf16 %v99
    %v224 = vunpack.c.l.s8.bf16 %v100
    %v225 = vunpack.c.l.s8.bf16 %v101
    %v226 = vunpack.c.h.s8.bf16 %v98
    %v227 = vunpack.c.h.s8.bf16 %v99
    %v228 = vunpack.c.h.s8.bf16 %v100
    %v229 = vunpack.c.h.s8.bf16 %v101
    %v230 = vunpack.c.l.s8.bf16 %v102
    %v231 = vunpack.c.l.s8.bf16 %v103
    %v232 = vunpack.c.l.s8.bf16 %v104
    %v233 = vunpack.c.l.s8.bf16 %v105
    %v234 = vunpack.c.h.s8.bf16 %v102
    %v235 = vunpack.c.h.s8.bf16 %v103
    %v236 = vunpack.c.h.s8.bf16 %v104
    %v237 = vunpack.c.h.s8.bf16 %v105
    %v238 = vunpack.c.l.s8.bf16 %v106
    %v239 = vunpack.c.l.s8.bf16 %v107
    %v240 = vunpack.c.l.s8.bf16 %v108
    %v241 = vunpack.c.l.s8.bf16 %v109
    %v242 = vunpack.c.h.s8.bf16 %v106
    %v243 = vunpack.c.h.s8.bf16 %v107
    %v244 = vunpack.c.h.s8.bf16 %v108
    %v245 = vunpack.c.h.s8.bf16 %v109
    %v246 = vunpack.c.l.s8.bf16 %v110
    %v247 = vunpack.c.l.s8.bf16 %v111
    %v248 = vunpack.c.l.s8.bf16 %v112
    %v249 = vunpack.c.l.s8.bf16 %v113
    %v250 = vunpack.c.h.s8.bf16 %v110
    %v251 = vunpack.c.h.s8.bf16 %v111
    %v252 = vunpack.c.h.s8.bf16 %v112
    %v253 = vunpack.c.h.s8.bf16 %v113
    %v254 = vunpack.c.l.s8.bf16 %v114
    %v255 = vunpack.c.l.s8.bf16 %v115
    %v256 = vunpack.c.l.s8.bf16 %v116
    %v257 = vunpack.c.l.s8.bf16 %v117
    %v258 = vunpack.c.h.s8.bf16 %v114
    %v259 = vunpack.c.h.s8.bf16 %v115
    %v260 = vunpack.c.h.s8.bf16 %v116
    %v261 = vunpack.c.h.s8.bf16 %v117
    %v262 = vunpack.c.l.s8.bf16 %v118
    %v263 = vunpack.c.l.s8.bf16 %v119
    %v264 = vunpack.c.l.s8.bf16 %v120
    %v265 = vunpack.c.l.s8.bf16 %v121
    %v266 = vunpack.c.h.s8.bf16 %v118
    %v267 = vunpack.c.h.s8.bf16 %v119
    %v268 = vunpack.c.h.s8.bf16 %v120
    %v269 = vunpack.c.h.s8.bf16 %v121
    %v270 = vunpack.c.l.s8.bf16 %v122
    %v271 = vunpack.c.l.s8.bf16 %v123
    %v272 = vunpack.c.l.s8.bf16 %v124
    %v273 = vunpack.c.l.s8.bf16 %v125
    %v274 = vunpack.c.h.s8.bf16 %v122
    %v275 = vunpack.c.h.s8.bf16 %v123
    %v276 = vunpack.c.h.s8.bf16 %v124
    %v277 = vunpack.c.h.s8.bf16 %v125
    %v278 = vunpack.c.l.s8.bf16 %v126
    %v279 = vunpack.c.l.s8.bf16 %v127
    %v280 = vunpack.c.l.s8.bf16 %v128
    %v281 = vunpack.c.l.s8.bf16 %v129
    %v282 = vunpack.c.h.s8.bf16 %v126
    %v283 = vunpack.c.h.s8.bf16 %v127
    %v284 = vunpack.c.h.s8.bf16 %v128
    %v285 = vunpack.c.h.s8.bf16 %v129
    %v286 = vunpack.c.l.s8.bf16 %v130
    %v287 = vunpack.c.l.s8.bf16 %v131
    %v288 = vunpack.c.l.s8.bf16 %v132
    %v289 = vunpack.c.l.s8.bf16 %v133
    %v290 = vunpack.c.h.s8.bf16 %v130
    %v291 = vunpack.c.h.s8.bf16 %v131
    %v292 = vunpack.c.h.s8.bf16 %v132
    %v293 = vunpack.c.h.s8.bf16 %v133
    %v294 = vunpack.c.l.s8.bf16 %v134
    %v295 = vunpack.c.l.s8.bf16 %v135
    %v296 = vunpack.c.l.s8.bf16 %v136
    %v297 = vunpack.c.l.s8.bf16 %v137
    %v298 = vunpack.c.h.s8.bf16 %v134
    %v299 = vunpack.c.h.s8.bf16 %v135
    %v300 = vunpack.c.h.s8.bf16 %v136
    %v301 = vunpack.c.h.s8.bf16 %v137
    %v302 = vunpack.c.l.s8.bf16 %v138
    %v303 = vunpack.c.l.s8.bf16 %v139
    %v304 = vunpack.c.l.s8.bf16 %v140
    %v305 = vunpack.c.l.s8.bf16 %v141
    %v306 = vunpack.c.h.s8.bf16 %v138
    %v307 = vunpack.c.h.s8.bf16 %v139
    %v308 = vunpack.c.h.s8.bf16 %v140
    %v309 = vunpack.c.h.s8.bf16 %v141
    %v310 = vunpack.c.l.s8.bf16 %v142
    %v311 = vunpack.c.l.s8.bf16 %v143
    %v312 = vunpack.c.l.s8.bf16 %v144
    %v313 = vunpack.c.l.s8.bf16 %v145
    %v314 = vunpack.c.h.s8.bf16 %v142
    %v315 = vunpack.c.h.s8.bf16 %v143
    %v316 = vunpack.c.h.s8.bf16 %v144
    %v317 = vunpack.c.h.s8.bf16 %v145
    %v318 = vunpack.c.l.s8.bf16 %v146
    %v319 = vunpack.c.l.s8.bf16 %v147
    %v320 = vunpack.c.l.s8.bf16 %v148
    %v321 = vunpack.c.l.s8.bf16 %v149
    %v322 = vunpack.c.h.s8.bf16 %v146
    %v323 = vunpack.c.h.s8.bf16 %v147
    %v324 = vunpack.c.h.s8.bf16 %v148
    %v325 = vunpack.c.h.s8.bf16 %v149
    %v326 = vunpack.c.l.s8.bf16 %v150
    %v327 = vunpack.c.l.s8.bf16 %v151
    %v328 = vunpack.c.l.s8.bf16 %v152
    %v329 = vunpack.c.l.s8.bf16 %v153
    %v330 = vunpack.c.h.s8.bf16 %v150
    %v331 = vunpack.c.h.s8.bf16 %v151
    %v332 = vunpack.c.h.s8.bf16 %v152
    %v333 = vunpack.c.h.s8.bf16 %v153
    %v334 = vunpack.c.l.s8.bf16 %v154
    %v335 = vunpack.c.l.s8.bf16 %v155
    %v336 = vunpack.c.l.s8.bf16 %v156
    %v337 = vunpack.c.l.s8.bf16 %v157
    %v338 = vunpack.c.h.s8.bf16 %v154
    %v339 = vunpack.c.h.s8.bf16 %v155
    %v340 = vunpack.c.h.s8.bf16 %v156
    %v341 = vunpack.c.h.s8.bf16 %v157
    %v342 = vunpack.c.l.s8.bf16 %v158
    %v343 = vunpack.c.l.s8.bf16 %v159
    %v344 = vunpack.c.l.s8.bf16 %v160
    %v345 = vunpack.c.l.s8.bf16 %v161
    %v346 = vunpack.c.h.s8.bf16 %v158
    %v347 = vunpack.c.h.s8.bf16 %v159
    %v348 = vunpack.c.h.s8.bf16 %v160
    %v349 = vunpack.c.h.s8.bf16 %v161
    %v350 = vunpack.c.l.s8.bf16 %v162
    %v351 = vunpack.c.l.s8.bf16 %v163
    %v352 = vunpack.c.l.s8.bf16 %v164
    %v353 = vunpack.c.l.s8.bf16 %v165
    %v354 = vunpack.c.h.s8.bf16 %v162
    %v355 = vunpack.c.h.s8.bf16 %v163
    %v356 = vunpack.c.h.s8.bf16 %v164
    %v357 = vunpack.c.h.s8.bf16 %v165
    %v361 = vunpack.c.l.b16 %v61
    %v362 = vunpack.c.h.b16 %v61
    %v363 = vunpack.c.l.b16 %v62
    %v364 = vunpack.c.h.b16 %v62
    %v365 = vunpack.c.l.b16 %v63
    %v366 = vunpack.c.h.b16 %v63
    %v367 = vpack.c.b16 %v361, %v361
    %v368 = vpack.c.b16 %v362, %v362
    %v369 = vpack.c.b16 %v363, %v363
    %v370 = vpack.c.b16 %v364, %v364
    %v371 = vpack.c.b16 %v365, %v365
    %v372 = vpack.c.b16 %v366, %v366
    %379 = vmatprep.subr.bf16.mxu0 %v167
    %380 = vmatpush1.bf16.msra.mxu0 %v166
    %381 = vmatprep.subr.bf16.mxu0 %v171
    %382 = vmatpush1.bf16.msra.mxu0 %v170
    %383 = vmatprep.subr.bf16.mxu0 %v175
    %384 = vmatpush1.bf16.msra.mxu0 %v174
    %385 = vmatprep.subr.bf16.mxu0 %v179
    %386 = vmatpush1.bf16.msra.mxu0 %v178
    %387 = vmatprep.subr.bf16.mxu0 %v183
    %388 = vmatpush1.bf16.msra.mxu0 %v182
    %389 = vmatprep.subr.bf16.mxu0 %v187
    %390 = vmatpush1.bf16.msra.mxu0 %v186
    %391 = vmatprep.subr.bf16.mxu0 %v191
    %392 = vmatpush1.bf16.msra.mxu0 %v190
    %393 = vmatprep.subr.bf16.mxu0 %v195
    %394 = vmatpush1.bf16.msra.mxu0 %v194
    %395 = vmatprep.subr.bf16.mxu0 %v199
    %396 = vmatpush1.bf16.msra.mxu0 %v198
    %397 = vmatprep.subr.bf16.mxu0 %v203
    %398 = vmatpush1.bf16.msra.mxu0 %v202
    %399 = vmatprep.subr.bf16.mxu0 %v207
    %400 = vmatpush1.bf16.msra.mxu0 %v206
    %401 = vmatprep.subr.bf16.mxu0 %v211
    %402 = vmatpush1.bf16.msra.mxu0 %v210
    %403 = vmatprep.subr.bf16.mxu0 %v215
    %404 = vmatpush1.bf16.msra.mxu0 %v214
    %405 = vmatprep.subr.bf16.mxu0 %v219
    %406 = vmatpush1.bf16.msra.mxu0 %v218
    %407 = vmatprep.subr.bf16.mxu0 %v223
    %408 = vmatpush1.bf16.msra.mxu0 %v222
    %409 = vmatprep.subr.bf16.mxu0 %v227
    %410 = vmatpush1.bf16.msra.mxu0 %v226
    %411 = vmatprep.mubr.bf16.mxu0 %v368
    %412 = vmatmul.mubr.bf16.gmra.mrb[0].mxu0 %v367
    %v413 = vpop.f32.mrb[0].mxu0
    %v414 = vadd.f32 0.0, %v413
    %v415 = vpop.f32.mrb[0].mxu0
    %v416 = vadd.f32 0.0, %v415
    %v417 = vpop.f32.mrb[0].mxu0
    %v418 = vpop.f32.mrb[0].mxu0
    %419 = vdwg.mxu0
    %420 = vmatprep.subr.bf16.mxu0 %v231
    %421 = vmatpush1.bf16.msra.mxu0 %v230
    %422 = vmatprep.subr.bf16.mxu0 %v235
    %423 = vmatpush1.bf16.msra.mxu0 %v234
    %424 = vmatprep.subr.bf16.mxu0 %v239
    %425 = vmatpush1.bf16.msra.mxu0 %v238
    %426 = vmatprep.subr.bf16.mxu0 %v243
    %427 = vmatpush1.bf16.msra.mxu0 %v242
    %428 = vmatprep.subr.bf16.mxu0 %v247
    %429 = vmatpush1.bf16.msra.mxu0 %v246
    %430 = vmatprep.subr.bf16.mxu0 %v251
    %431 = vmatpush1.bf16.msra.mxu0 %v250
    %432 = vmatprep.subr.bf16.mxu0 %v255
    %433 = vmatpush1.bf16.msra.mxu0 %v254
    %434 = vmatprep.subr.bf16.mxu0 %v259
    %435 = vmatpush1.bf16.msra.mxu0 %v258
    %436 = vmatprep.subr.bf16.mxu0 %v263
    %437 = vmatpush1.bf16.msra.mxu0 %v262
    %438 = vmatprep.subr.bf16.mxu0 %v267
    %439 = vmatpush1.bf16.msra.mxu0 %v266
    %440 = vmatprep.subr.bf16.mxu0 %v271
    %441 = vmatpush1.bf16.msra.mxu0 %v270
    %442 = vmatprep.subr.bf16.mxu0 %v275
    %443 = vmatpush1.bf16.msra.mxu0 %v274
    %444 = vmatprep.subr.bf16.mxu0 %v279
    %445 = vmatpush1.bf16.msra.mxu0 %v278
    %446 = vmatprep.subr.bf16.mxu0 %v283
    %447 = vmatpush1.bf16.msra.mxu0 %v282
    %448 = vmatprep.subr.bf16.mxu0 %v287
    %449 = vmatpush1.bf16.msra.mxu0 %v286
    %450 = vmatprep.subr.bf16.mxu0 %v291
    %451 = vmatpush1.bf16.msra.mxu0 %v290
    %452 = vmatprep.mubr.bf16.mxu0 %v370
    %453 = vmatmul.mubr.bf16.gmra.mrb[0].mxu0 %v369
    %v454 = vpop.f32.mrb[0].mxu0
    %v455 = vadd.f32 %v414, %v454
    %v456 = vpop.f32.mrb[0].mxu0
    %v457 = vadd.f32 %v416, %v456
    %v458 = vpop.f32.mrb[0].mxu0
    %v459 = vpop.f32.mrb[0].mxu0
    %460 = vdwg.mxu0
    %461 = vmatprep.subr.bf16.mxu0 %v295
    %462 = vmatpush1.bf16.msra.mxu0 %v294
    %463 = vmatprep.subr.bf16.mxu0 %v299
    %464 = vmatpush1.bf16.msra.mxu0 %v298
    %465 = vmatprep.subr.bf16.mxu0 %v303
    %466 = vmatpush1.bf16.msra.mxu0 %v302
    %467 = vmatprep.subr.bf16.mxu0 %v307
    %468 = vmatpush1.bf16.msra.mxu0 %v306
    %469 = vmatprep.subr.bf16.mxu0 %v311
    %470 = vmatpush1.bf16.msra.mxu0 %v310
    %471 = vmatprep.subr.bf16.mxu0 %v315
    %472 = vmatpush1.bf16.msra.mxu0 %v314
    %473 = vmatprep.subr.bf16.mxu0 %v319
    %474 = vmatpush1.bf16.msra.mxu0 %v318
    %475 = vmatprep.subr.bf16.mxu0 %v323
    %476 = vmatpush1.bf16.msra.mxu0 %v322
    %477 = vmatprep.subr.bf16.mxu0 %v327
    %478 = vmatpush1.bf16.msra.mxu0 %v326
    %479 = vmatprep.subr.bf16.mxu0 %v331
    %480 = vmatpush1.bf16.msra.mxu0 %v330
    %481 = vmatprep.subr.bf16.mxu0 %v335
    %482 = vmatpush1.bf16.msra.mxu0 %v334
    %483 = vmatprep.subr.bf16.mxu0 %v339
    %484 = vmatpush1.bf16.msra.mxu0 %v338
    %485 = vmatprep.subr.bf16.mxu0 %v343
    %486 = vmatpush1.bf16.msra.mxu0 %v342
    %487 = vmatprep.subr.bf16.mxu0 %v347
    %488 = vmatpush1.bf16.msra.mxu0 %v346
    %489 = vmatprep.subr.bf16.mxu0 %v351
    %490 = vmatpush1.bf16.msra.mxu0 %v350
    %491 = vmatprep.subr.bf16.mxu0 %v355
    %492 = vmatpush1.bf16.msra.mxu0 %v354
    %493 = vmatprep.mubr.bf16.mxu0 %v372
    %494 = vmatmul.mubr.bf16.gmra.mrb[0].mxu0 %v371
    %v495 = vpop.f32.mrb[0].mxu0
    %v496 = vadd.f32 %v455, %v495
    %v497 = vpop.f32.mrb[0].mxu0
    %v498 = vadd.f32 %v457, %v497
    %v499 = vpop.f32.mrb[0].mxu0
    %v500 = vpop.f32.mrb[0].mxu0
    %501 = vdwg.mxu0
    %502 = vmatprep.subr.bf16.mxu0 %v169
    %503 = vmatpush1.bf16.msra.mxu0 %v168
    %504 = vmatprep.subr.bf16.mxu0 %v173
    %505 = vmatpush1.bf16.msra.mxu0 %v172
    %506 = vmatprep.subr.bf16.mxu0 %v177
    %507 = vmatpush1.bf16.msra.mxu0 %v176
    %508 = vmatprep.subr.bf16.mxu0 %v181
    %509 = vmatpush1.bf16.msra.mxu0 %v180
    %510 = vmatprep.subr.bf16.mxu0 %v185
    %511 = vmatpush1.bf16.msra.mxu0 %v184
    %512 = vmatprep.subr.bf16.mxu0 %v189
    %513 = vmatpush1.bf16.msra.mxu0 %v188
    %514 = vmatprep.subr.bf16.mxu0 %v193
    %515 = vmatpush1.bf16.msra.mxu0 %v192
    %516 = vmatprep.subr.bf16.mxu0 %v197
    %517 = vmatpush1.bf16.msra.mxu0 %v196
    %518 = vmatprep.subr.bf16.mxu0 %v201
    %519 = vmatpush1.bf16.msra.mxu0 %v200
    %520 = vmatprep.subr.bf16.mxu0 %v205
    %521 = vmatpush1.bf16.msra.mxu0 %v204
    %522 = vmatprep.subr.bf16.mxu0 %v209
    %523 = vmatpush1.bf16.msra.mxu0 %v208
    %524 = vmatprep.subr.bf16.mxu0 %v213
    %525 = vmatpush1.bf16.msra.mxu0 %v212
    %526 = vmatprep.subr.bf16.mxu0 %v217
    %527 = vmatpush1.bf16.msra.mxu0 %v216
    %528 = vmatprep.subr.bf16.mxu0 %v221
    %529 = vmatpush1.bf16.msra.mxu0 %v220
    %530 = vmatprep.subr.bf16.mxu0 %v225
    %531 = vmatpush1.bf16.msra.mxu0 %v224
    %532 = vmatprep.subr.bf16.mxu0 %v229
    %533 = vmatpush1.bf16.msra.mxu0 %v228
    %534 = vmatprep.mubr.bf16.mxu0 %v368
    %535 = vmatmul.mubr.bf16.gmra.mrb[0].mxu0 %v367
    %v536 = vpop.f32.mrb[0].mxu0
    %v537 = vadd.f32 0.0, %v536
    %v538 = vpop.f32.mrb[0].mxu0
    %v539 = vadd.f32 0.0, %v538
    %v540 = vpop.f32.mrb[0].mxu0
    %v541 = vpop.f32.mrb[0].mxu0
    %542 = vdwg.mxu0
    %543 = vmatprep.subr.bf16.mxu0 %v233
    %544 = vmatpush1.bf16.msra.mxu0 %v232
    %545 = vmatprep.subr.bf16.mxu0 %v237
    %546 = vmatpush1.bf16.msra.mxu0 %v236
    %547 = vmatprep.subr.bf16.mxu0 %v241
    %548 = vmatpush1.bf16.msra.mxu0 %v240
    %549 = vmatprep.subr.bf16.mxu0 %v245
    %550 = vmatpush1.bf16.msra.mxu0 %v244
    %551 = vmatprep.subr.bf16.mxu0 %v249
    %552 = vmatpush1.bf16.msra.mxu0 %v248
    %553 = vmatprep.subr.bf16.mxu0 %v253
    %554 = vmatpush1.bf16.msra.mxu0 %v252
    %555 = vmatprep.subr.bf16.mxu0 %v257
    %556 = vmatpush1.bf16.msra.mxu0 %v256
    %557 = vmatprep.subr.bf16.mxu0 %v261
    %558 = vmatpush1.bf16.msra.mxu0 %v260
    %559 = vmatprep.subr.bf16.mxu0 %v265
    %560 = vmatpush1.bf16.msra.mxu0 %v264
    %561 = vmatprep.subr.bf16.mxu0 %v269
    %562 = vmatpush1.bf16.msra.mxu0 %v268
    %563 = vmatprep.subr.bf16.mxu0 %v273
    %564 = vmatpush1.bf16.msra.mxu0 %v272
    %565 = vmatprep.subr.bf16.mxu0 %v277
    %566 = vmatpush1.bf16.msra.mxu0 %v276
    %567 = vmatprep.subr.bf16.mxu0 %v281
    %568 = vmatpush1.bf16.msra.mxu0 %v280
    %569 = vmatprep.subr.bf16.mxu0 %v285
    %570 = vmatpush1.bf16.msra.mxu0 %v284
    %571 = vmatprep.subr.bf16.mxu0 %v289
    %572 = vmatpush1.bf16.msra.mxu0 %v288
    %573 = vmatprep.subr.bf16.mxu0 %v293
    %574 = vmatpush1.bf16.msra.mxu0 %v292
    %575 = vmatprep.mubr.bf16.mxu0 %v370
    %576 = vmatmul.mubr.bf16.gmra.mrb[0].mxu0 %v369
    %v577 = vpop.f32.mrb[0].mxu0
    %v578 = vadd.f32 %v537, %v577
    %v579 = vpop.f32.mrb[0].mxu0
    %v580 = vadd.f32 %v539, %v579
    %v581 = vpop.f32.mrb[0].mxu0
    %v582 = vpop.f32.mrb[0].mxu0
    %583 = vdwg.mxu0
    %584 = vmatprep.subr.bf16.mxu0 %v297
    %585 = vmatpush1.bf16.msra.mxu0 %v296
    %586 = vmatprep.subr.bf16.mxu0 %v301
    %587 = vmatpush1.bf16.msra.mxu0 %v300
    %588 = vmatprep.subr.bf16.mxu0 %v305
    %589 = vmatpush1.bf16.msra.mxu0 %v304
    %590 = vmatprep.subr.bf16.mxu0 %v309
    %591 = vmatpush1.bf16.msra.mxu0 %v308
    %592 = vmatprep.subr.bf16.mxu0 %v313
    %593 = vmatpush1.bf16.msra.mxu0 %v312
    %594 = vmatprep.subr.bf16.mxu0 %v317
    %595 = vmatpush1.bf16.msra.mxu0 %v316
    %596 = vmatprep.subr.bf16.mxu0 %v321
    %597 = vmatpush1.bf16.msra.mxu0 %v320
    %598 = vmatprep.subr.bf16.mxu0 %v325
    %599 = vmatpush1.bf16.msra.mxu0 %v324
    %600 = vmatprep.subr.bf16.mxu0 %v329
    %601 = vmatpush1.bf16.msra.mxu0 %v328
    %602 = vmatprep.subr.bf16.mxu0 %v333
    %603 = vmatpush1.bf16.msra.mxu0 %v332
    %604 = vmatprep.subr.bf16.mxu0 %v337
    %605 = vmatpush1.bf16.msra.mxu0 %v336
    %606 = vmatprep.subr.bf16.mxu0 %v341
    %607 = vmatpush1.bf16.msra.mxu0 %v340
    %608 = vmatprep.subr.bf16.mxu0 %v345
    %609 = vmatpush1.bf16.msra.mxu0 %v344
    %610 = vmatprep.subr.bf16.mxu0 %v349
    %611 = vmatpush1.bf16.msra.mxu0 %v348
    %612 = vmatprep.subr.bf16.mxu0 %v353
    %613 = vmatpush1.bf16.msra.mxu0 %v352
    %614 = vmatprep.subr.bf16.mxu0 %v357
    %615 = vmatpush1.bf16.msra.mxu0 %v356
    %616 = vmatprep.mubr.bf16.mxu0 %v372
    %617 = vmatmul.mubr.bf16.gmra.mrb[0].mxu0 %v371
    %v618 = vpop.f32.mrb[0].mxu0
    %v619 = vadd.f32 %v578, %v618
    %v620 = vpop.f32.mrb[0].mxu0
    %v621 = vadd.f32 %v580, %v620
    %v622 = vpop.f32.mrb[0].mxu0
    %v623 = vpop.f32.mrb[0].mxu0
    %624 = vdwg.mxu0
    %v626 = vlaneseq
    %v627 = vshrl.u32 %v626, 7
    %v628 = vsub.s32 0, %v627
    %v629 = vrot.slane %v64, %v628
    %v630 = vlaneseq
    %v631 = vshrl.u32 %v630, 7
    %v632 = vsub.s32 1, %v631
    %v633 = vrot.slane %v64, %v632
    %v634 = vlaneseq
    %v635 = vshrl.u32 %v634, 7
    %v636 = vsub.s32 2, %v635
    %v637 = vrot.slane %v64, %v636
    %v638 = vlaneseq
    %v639 = vshrl.u32 %v638, 7
    %v640 = vsub.s32 3, %v639
    %v641 = vrot.slane %v64, %v640
    %v646 = vmul.f32 %v496, %v629
    %v647 = vmul.f32 %v498, %v633
    %v648 = vmul.f32 %v619, %v637
    %v649 = vmul.f32 %v621, %v641
    %v651 = vlaneseq
    %v652 = vshrl.u32 %v651, 7
    %v653 = vsub.s32 0, %v652
    %v654 = vrot.slane %v65, %v653
    %v655 = vlaneseq
    %v656 = vshrl.u32 %v655, 7
    %v657 = vsub.s32 1, %v656
    %v658 = vrot.slane %v65, %v657
    %v659 = vlaneseq
    %v660 = vshrl.u32 %v659, 7
    %v661 = vsub.s32 2, %v660
    %v662 = vrot.slane %v65, %v661
    %v663 = vlaneseq
    %v664 = vshrl.u32 %v663, 7
    %v665 = vsub.s32 3, %v664
    %v666 = vrot.slane %v65, %v665
    %v671 = vadd.f32 %v646, %v654
    %v672 = vadd.f32 %v647, %v658
    %v673 = vadd.f32 %v648, %v662
    %v674 = vadd.f32 %v649, %v666
    %v675 = vmul.f32 %v671, 0.2
    %v676 = vmul.f32 %v672, 0.2
    %v677 = vmul.f32 %v673, 0.2
    %v678 = vmul.f32 %v674, 0.2
    %v679 = vmax.f32 %v671, %v675
    %v680 = vmax.f32 %v672, %v676
    %v681 = vmax.f32 %v673, %v677
    %v682 = vmax.f32 %v674, %v678
    %v683 = vpack.c.bf16 %v679, %v679
    %v684 = vpack.c.bf16 %v680, %v680
    %v685 = vpack.c.bf16 %v681, %v681
    %v686 = vpack.c.bf16 %v682, %v682
    %v687 = vld [vmem:[#allocation8] sm:$0xff]
    %v688 = vld [vmem:[#allocation8 + $0x8] sm:$0xff]
    %v689 = vld [vmem:[#allocation8 + $0x10] sm:$0xff]
    %v690 = vld [vmem:[#allocation8 + $0x18] sm:$0xff]
    %v691 = vld [vmem:[#allocation8 + $0x20] sm:$0xff]
    %v692 = vld [vmem:[#allocation8 + $0x28] sm:$0xff]
    %v693 = vld [vmem:[#allocation8 + $0x30] sm:$0xff]
    %v694 = vld [vmem:[#allocation8 + $0x38] sm:$0xff]
    %v695 = vld [vmem:[#allocation8 + $0x40] sm:$0xff]
    %v696 = vld [vmem:[#allocation8 + $0x48] sm:$0xff]
    %v697 = vld [vmem:[#allocation8 + $0x50] sm:$0xff]
    %v698 = vld [vmem:[#allocation8 + $0x58] sm:$0xff]
    %v699 = vld [vmem:[#allocation8 + $0x60] sm:$0xff]
    %v700 = vld [vmem:[#allocation8 + $0x68] sm:$0xff]
    %v701 = vld [vmem:[#allocation8 + $0x70] sm:$0xff]
    %v702 = vld [vmem:[#allocation8 + $0x78] sm:$0xff]
    %v703 = vld [vmem:[#allocation8 + $0x80] sm:$0xff]
    %v704 = vld [vmem:[#allocation8 + $0x88] sm:$0xff]
    %v705 = vld [vmem:[#allocation8 + $0x90] sm:$0xff]
    %v706 = vld [vmem:[#allocation8 + $0x98] sm:$0xff]
    %v707 = vld [vmem:[#allocation8 + $0xa0] sm:$0xff]
    %v708 = vld [vmem:[#allocation8 + $0xa8] sm:$0xff]
    %v709 = vld [vmem:[#allocation8 + $0xb0] sm:$0xff]
    %v710 = vld [vmem:[#allocation8 + $0xb8] sm:$0xff]
    %v711 = vld [vmem:[#allocation8 + $0xc0] sm:$0xff]
    %v712 = vld [vmem:[#allocation8 + $0xc8] sm:$0xff]
    %v713 = vld [vmem:[#allocation8 + $0xd0] sm:$0xff]
    %v714 = vld [vmem:[#allocation8 + $0xd8] sm:$0xff]
    %v715 = vld [vmem:[#allocation8 + $0xe0] sm:$0xff]
    %v716 = vld [vmem:[#allocation8 + $0xe8] sm:$0xff]
    %v717 = vld [vmem:[#allocation8 + $0xf0] sm:$0xff]
    %v718 = vld [vmem:[#allocation8 + $0xf8] sm:$0xff]
    %v719 = vunpack.c.l.s8.bf16 %v687
    %v720 = vunpack.c.l.s8.bf16 %v688
    %v721 = vunpack.c.h.s8.bf16 %v687
    %v722 = vunpack.c.h.s8.bf16 %v688
    %v723 = vunpack.c.l.s8.bf16 %v689
    %v724 = vunpack.c.l.s8.bf16 %v690
    %v725 = vunpack.c.h.s8.bf16 %v689
    %v726 = vunpack.c.h.s8.bf16 %v690
    %v727 = vunpack.c.l.s8.bf16 %v691
    %v728 = vunpack.c.l.s8.bf16 %v692
    %v729 = vunpack.c.h.s8.bf16 %v691
    %v730 = vunpack.c.h.s8.bf16 %v692
    %v731 = vunpack.c.l.s8.bf16 %v693
    %v732 = vunpack.c.l.s8.bf16 %v694
    %v733 = vunpack.c.h.s8.bf16 %v693
    %v734 = vunpack.c.h.s8.bf16 %v694
    %v735 = vunpack.c.l.s8.bf16 %v695
    %v736 = vunpack.c.l.s8.bf16 %v696
    %v737 = vunpack.c.h.s8.bf16 %v695
    %v738 = vunpack.c.h.s8.bf16 %v696
    %v739 = vunpack.c.l.s8.bf16 %v697
    %v740 = vunpack.c.l.s8.bf16 %v698
    %v741 = vunpack.c.h.s8.bf16 %v697
    %v742 = vunpack.c.h.s8.bf16 %v698
    %v743 = vunpack.c.l.s8.bf16 %v699
    %v744 = vunpack.c.l.s8.bf16 %v700
    %v745 = vunpack.c.h.s8.bf16 %v699
    %v746 = vunpack.c.h.s8.bf16 %v700
    %v747 = vunpack.c.l.s8.bf16 %v701
    %v748 = vunpack.c.l.s8.bf16 %v702
    %v749 = vunpack.c.h.s8.bf16 %v701
    %v750 = vunpack.c.h.s8.bf16 %v702
    %v751 = vunpack.c.l.s8.bf16 %v703
    %v752 = vunpack.c.l.s8.bf16 %v704
    %v753 = vunpack.c.h.s8.bf16 %v703
    %v754 = vunpack.c.h.s8.bf16 %v704
    %v755 = vunpack.c.l.s8.bf16 %v705
    %v756 = vunpack.c.l.s8.bf16 %v706
    %v757 = vunpack.c.h.s8.bf16 %v705
    %v758 = vunpack.c.h.s8.bf16 %v706
    %v759 = vunpack.c.l.s8.bf16 %v707
    %v760 = vunpack.c.l.s8.bf16 %v708
    %v761 = vunpack.c.h.s8.bf16 %v707
    %v762 = vunpack.c.h.s8.bf16 %v708
    %v763 = vunpack.c.l.s8.bf16 %v709
    %v764 = vunpack.c.l.s8.bf16 %v710
    %v765 = vunpack.c.h.s8.bf16 %v709
    %v766 = vunpack.c.h.s8.bf16 %v710
    %v767 = vunpack.c.l.s8.bf16 %v711
    %v768 = vunpack.c.l.s8.bf16 %v712
    %v769 = vunpack.c.h.s8.bf16 %v711
    %v770 = vunpack.c.h.s8.bf16 %v712
    %v771 = vunpack.c.l.s8.bf16 %v713
    %v772 = vunpack.c.l.s8.bf16 %v714
    %v773 = vunpack.c.h.s8.bf16 %v713
    %v774 = vunpack.c.h.s8.bf16 %v714
    %v775 = vunpack.c.l.s8.bf16 %v715
    %v776 = vunpack.c.l.s8.bf16 %v716
    %v777 = vunpack.c.h.s8.bf16 %v715
    %v778 = vunpack.c.h.s8.bf16 %v716
    %v779 = vunpack.c.l.s8.bf16 %v717
    %v780 = vunpack.c.l.s8.bf16 %v718
    %v781 = vunpack.c.h.s8.bf16 %v717
    %v782 = vunpack.c.h.s8.bf16 %v718
    %783 = vmatprep.subr.bf16.mxu0 %v720
    %784 = vmatpush1.bf16.msra.mxu0 %v719
    %785 = vmatprep.subr.bf16.mxu0 %v722
    %786 = vmatpush1.bf16.msra.mxu0 %v721
    %787 = vmatprep.subr.bf16.mxu0 %v724
    %788 = vmatpush1.bf16.msra.mxu0 %v723
    %789 = vmatprep.subr.bf16.mxu0 %v726
    %790 = vmatpush1.bf16.msra.mxu0 %v725
    %791 = vmatprep.subr.bf16.mxu0 %v728
    %792 = vmatpush1.bf16.msra.mxu0 %v727
    %793 = vmatprep.subr.bf16.mxu0 %v730
    %794 = vmatpush1.bf16.msra.mxu0 %v729
    %795 = vmatprep.subr.bf16.mxu0 %v732
    %796 = vmatpush1.bf16.msra.mxu0 %v731
    %797 = vmatprep.subr.bf16.mxu0 %v734
    %798 = vmatpush1.bf16.msra.mxu0 %v733
    %799 = vmatprep.subr.bf16.mxu0 %v736
    %800 = vmatpush1.bf16.msra.mxu0 %v735
    %801 = vmatprep.subr.bf16.mxu0 %v738
    %802 = vmatpush1.bf16.msra.mxu0 %v737
    %803 = vmatprep.subr.bf16.mxu0 %v740
    %804 = vmatpush1.bf16.msra.mxu0 %v739
    %805 = vmatprep.subr.bf16.mxu0 %v742
    %806 = vmatpush1.bf16.msra.mxu0 %v741
    %807 = vmatprep.subr.bf16.mxu0 %v744
    %808 = vmatpush1.bf16.msra.mxu0 %v743
    %809 = vmatprep.subr.bf16.mxu0 %v746
    %810 = vmatpush1.bf16.msra.mxu0 %v745
    %811 = vmatprep.subr.bf16.mxu0 %v748
    %812 = vmatpush1.bf16.msra.mxu0 %v747
    %813 = vmatprep.subr.bf16.mxu0 %v750
    %814 = vmatpush1.bf16.msra.mxu0 %v749
    %815 = vmatprep.mubr.bf16.mxu0 %v684
    %816 = vmatmul.mubr.bf16.gmra.mrb[0].mxu0 %v683
    %v817 = vpop.f32.mrb[0].mxu0
    %v818 = vadd.f32 0.0, %v817
    %v819 = vpop.f32.mrb[0].mxu0
    %v820 = vadd.f32 0.0, %v819
    %v821 = vpop.f32.mrb[0].mxu0
    %v822 = vpop.f32.mrb[0].mxu0
    %823 = vdwg.mxu0
    %824 = vmatprep.subr.bf16.mxu0 %v752
    %825 = vmatpush1.bf16.msra.mxu0 %v751
    %826 = vmatprep.subr.bf16.mxu0 %v754
    %827 = vmatpush1.bf16.msra.mxu0 %v753
    %828 = vmatprep.subr.bf16.mxu0 %v756
    %829 = vmatpush1.bf16.msra.mxu0 %v755
    %830 = vmatprep.subr.bf16.mxu0 %v758
    %831 = vmatpush1.bf16.msra.mxu0 %v757
    %832 = vmatprep.subr.bf16.mxu0 %v760
    %833 = vmatpush1.bf16.msra.mxu0 %v759
    %834 = vmatprep.subr.bf16.mxu0 %v762
    %835 = vmatpush1.bf16.msra.mxu0 %v761
    %836 = vmatprep.subr.bf16.mxu0 %v764
    %837 = vmatpush1.bf16.msra.mxu0 %v763
    %838 = vmatprep.subr.bf16.mxu0 %v766
    %839 = vmatpush1.bf16.msra.mxu0 %v765
    %840 = vmatprep.subr.bf16.mxu0 %v768
    %841 = vmatpush1.bf16.msra.mxu0 %v767
    %842 = vmatprep.subr.bf16.mxu0 %v770
    %843 = vmatpush1.bf16.msra.mxu0 %v769
    %844 = vmatprep.subr.bf16.mxu0 %v772
    %845 = vmatpush1.bf16.msra.mxu0 %v771
    %846 = vmatprep.subr.bf16.mxu0 %v774
    %847 = vmatpush1.bf16.msra.mxu0 %v773
    %848 = vmatprep.subr.bf16.mxu0 %v776
    %849 = vmatpush1.bf16.msra.mxu0 %v775
    %850 = vmatprep.subr.bf16.mxu0 %v778
    %851 = vmatpush1.bf16.msra.mxu0 %v777
    %852 = vmatprep.subr.bf16.mxu0 %v780
    %853 = vmatpush1.bf16.msra.mxu0 %v779
    %854 = vmatprep.subr.bf16.mxu0 %v782
    %855 = vmatpush1.bf16.msra.mxu0 %v781
    %856 = vmatprep.mubr.bf16.mxu0 %v686
    %857 = vmatmul.mubr.bf16.gmra.mrb[0].mxu0 %v685
    %v858 = vpop.f32.mrb[0].mxu0
    %v859 = vadd.f32 %v818, %v858
    %v860 = vpop.f32.mrb[0].mxu0
    %v861 = vadd.f32 %v820, %v860
    %v862 = vpop.f32.mrb[0].mxu0
    %v863 = vpop.f32.mrb[0].mxu0
    %864 = vdwg.mxu0
    %v866 = vlaneseq
    %v867 = vshrl.u32 %v866, 7
    %v868 = vsub.s32 0, %v867
    %v869 = vrot.slane %v66, %v868
    %v870 = vlaneseq
    %v871 = vshrl.u32 %v870, 7
    %v872 = vsub.s32 1, %v871
    %v873 = vrot.slane %v66, %v872
    %v876 = vmul.f32 %v859, %v869
    %v877 = vmul.f32 %v861, %v873
    %v879 = vlaneseq
    %v880 = vshrl.u32 %v879, 7
    %v881 = vsub.s32 0, %v880
    %v882 = vrot.slane %v67, %v881
    %v883 = vlaneseq
    %v884 = vshrl.u32 %v883, 7
    %v885 = vsub.s32 1, %v884
    %v886 = vrot.slane %v67, %v885
    %v889 = vadd.f32 %v876, %v882
    %v890 = vadd.f32 %v877, %v886
    %v891 = vmul.f32 %v889, 0.2
    %v892 = vmul.f32 %v890, 0.2
    %v893 = vmax.f32 %v889, %v891
    %v894 = vmax.f32 %v890, %v892
    %v896 = vlaneseq
    %v897 = vshrl.u32 %v896, 7
    %v898 = vsub.s32 0, %v897
    %v899 = vrot.slane %v68, %v898
    %v900 = vlaneseq
    %v901 = vshrl.u32 %v900, 7
    %v902 = vsub.s32 1, %v901
    %v903 = vrot.slane %v68, %v902
    %v906 = vmul.f32 %v893, %v899
    %v907 = vmul.f32 %v894, %v903
    %v908 = vadd.f32 %v906, %v907
    %909 = vadd.xlane.f32.xlu0 %v908
    %v910 = vpop.xlane.xlu0 %909
    %v911 = vstv %s69
    %v912 = vadd.f32 %v910, %v911
    %v913 = vsub.f32 0.0, %v912
    %v914 = vmul.f32 %v913, 1.442695
    %v915 = vpow.pop %v914
    %v916 = vadd.f32 %v915, 1.0
    %v917 = vrcp.pop %v916
    %v918 = vmin.f32 %v917, 1.0
    %919 = vst [vmem:[#allocation9] sm:$0xff] %v918
    // Predicated region
    $region34: #{tpu_custom_call.1} parent=1 // pred_check
      _
    $region35: #{tpu_custom_call.1} parent=1 // pred_check_branch
      %921 = sbr.rel (0) target = $region37
    $region36: #{tpu_custom_call.1} parent=1 // pred_region
      %s923 = ssub.s32 128, 128
      %924 = vsyncadd [#allocation5], %s923
      %s926 = sshll.u32 [#allocation9], 4
      %s927 = int_to_ptr.vmem [resolvable:$true] %s926
      %929 = dma.vmem_to_hbm [thread:$0]  %s927, 128, %s5, [#allocation5]
    $region37: #{tpu_custom_call.1} parent=1 // pred_fallthru
      _
    // Predicated region
    $region38: #{tpu_custom_call.1} parent=1 // pred_check
      _
    $region39: #{tpu_custom_call.1} parent=1 // pred_check_branch
      %931 = sbr.rel (0) target = $region41
    $region40: #{tpu_custom_call.1} parent=1 // pred_region
      %932 = dma.done [#allocation5], 128
    $region41: #{tpu_custom_call.1} parent=1 // pred_fallthru
      _
    %933 = vsyncpa [#allocation4], 1
    %934 = vsyncpa [#allocation7], 1
    %935 = vsyncpa [#allocation5], 1

</llo_original>
